<compile_context>
chip_gen: v6e
topology: v6e:2x2x1
jax: 0.10.0
libtpu: 0.0.40
codegen_flags: <defaults>
</compile_context>

<pallas_src>
import functools

import jax
import jax.numpy as jnp
from jax.experimental import pallas as pl
from jax.experimental.pallas import tpu as pltpu


def _round_up(x, m):
    return (x + m - 1) // m * m


_SUBLANE = {4: 8, 2: 16, 1: 32}


def _mlp_kernel(x_ref, ln_ref, gu_ref, down_ref, o_ref, xn_ref, acc_ref,
                *, eps, ti):
    """Fused RMSNorm -> (gate|up) matmul -> SiLU*mul -> down matmul.

    Grid: (token tiles [parallel], intermediate tiles [arbitrary/reduction]).
    """
    k = pl.program_id(1)

    @pl.when(k == 0)
    def _():
        # RMSNorm in f32, computed once per token tile, stashed in VMEM scratch
        # in the activation dtype (bf16 for real models -> fast MXU path).
        xf = x_ref[...].astype(jnp.float32)
        var = jnp.mean(xf * xf, axis=-1, keepdims=True)
        xn = xf * jax.lax.rsqrt(var + eps) * ln_ref[...].astype(jnp.float32)
        xn_ref[...] = xn.astype(xn_ref.dtype)
        acc_ref[...] = jnp.zeros_like(acc_ref)

    xn = xn_ref[...]
    # One fused dot for gate and up: (tm, H) @ (H, 2*ti) -> (tm, 2*ti)
    gu = jnp.dot(xn, gu_ref[...], preferred_element_type=jnp.float32)
    g = gu[:, :ti]
    u = gu[:, ti:]
    # SiLU(gate) * up  (Llama hidden_act = "silu")
    h = (g * jax.nn.sigmoid(g)) * u
    acc_ref[...] += jnp.dot(h.astype(down_ref.dtype), down_ref[...],
                            preferred_element_type=jnp.float32)

    @pl.when(k == pl.num_programs(1) - 1)
    def _():
        o_ref[...] = acc_ref[...].astype(o_ref.dtype)


def prepare_mlp_weights(gate_w, up_w, down_w, *, ti=512):
    """Hoisted (call once per model, NOT per forward).

    gate_w / up_w: (I, H) torch nn.Linear convention; down_w: (H, I).
    Returns (gu_wt, down_wt, ti) where gu_wt is (H, 2*I) laid out so that the
    k-th block of width 2*ti holds [gate_k | up_k], and down_wt is (I, H).
    """
    I, H = gate_w.shape
    ti = min(ti, I)
    assert I % ti == 0, f"intermediate_size {I} must be divisible by ti {ti}"
    assert ti % 128 == 0 or ti == I, "ti must be lane-aligned (multiple of 128)"
    K = I // ti
    g = gate_w.T.reshape(H, K, ti)   # (H, K, ti)
    u = up_w.T.reshape(H, K, ti)     # (H, K, ti)
    gu_wt = jnp.concatenate([g, u], axis=2).reshape(H, 2 * I)
    down_wt = down_w.T               # (I, H)
    return gu_wt, down_wt, ti


def neuron_llama_mlp(x, ln_w, gu_wt, down_wt, *, ti, eps=1e-6, tm=256):
    """x: (B, S, H); gu_wt: (H, 2*I) packed; down_wt: (I, H); ln_w: (H,).

    Returns (output (B, S, H), residual=None) matching NeuronLlamaMLP.forward.
    ti must match the value used in prepare_mlp_weights.
    """
    B, S, H = x.shape
    I = down_wt.shape[0]
    assert gu_wt.shape == (H, 2 * I)
    assert I % ti == 0
    K = I // ti

    T = B * S
    x_dsz = jnp.dtype(x.dtype).itemsize
    w_dsz = jnp.dtype(gu_wt.dtype).itemsize
    sub = _SUBLANE.get(x_dsz, 8)

    # Token tile: multiple of the sublane packing, no bigger than (padded) T.
    tm_eff = min(_round_up(tm, sub), _round_up(T, sub))
    Tp = _round_up(T, tm_eff)

    xt = x.reshape(T, H)
    if Tp != T:
        xt = jnp.pad(xt, ((0, Tp - T), (0, 0)))   # zero rows: RMSNorm-safe (eps>0)
    ln_w2 = ln_w.reshape(1, H)

    grid = (Tp // tm_eff, K)

    # VMEM footprint (double-buffered inputs/outputs + persistent scratch).
    vmem_est = (
        2 * tm_eff * H * x_dsz          # x tile
        + 2 * H * w_dsz                 # rmsnorm weight
        + 2 * H * (2 * ti) * w_dsz      # fused gate|up weight tile
        + 2 * ti * H * w_dsz            # down weight tile
        + 2 * tm_eff * H * x_dsz        # output tile
        + tm_eff * H * x_dsz            # xn scratch
        + tm_eff * H * 4                # f32 accumulator
    )
    vmem_limit = int(min(max(vmem_est * 3 // 2 + (4 << 20), 32 << 20), 120 << 20))

    cost = pl.CostEstimate(
        flops=6 * T * H * I,                       # gate + up + down matmuls
        transcendentals=T * I,                     # sigmoid
        bytes_accessed=3 * H * I * w_dsz + 2 * T * H * x_dsz,
    )

    out = pl.pallas_call(
        functools.partial(_mlp_kernel, eps=eps, ti=ti),
        out_shape=jax.ShapeDtypeStruct((Tp, H), x.dtype),
        grid_spec=pltpu.PrefetchScalarGridSpec(
            num_scalar_prefetch=0,
            grid=grid,
            in_specs=[
                pl.BlockSpec((tm_eff, H), lambda t, k: (t, 0)),   # x tokens
                pl.BlockSpec((1, H), lambda t, k: (0, 0)),        # rmsnorm weight
                pl.BlockSpec((H, 2 * ti), lambda t, k: (0, k)),   # [gate|up] tile
                pl.BlockSpec((ti, H), lambda t, k: (k, 0)),       # down tile
            ],
            out_specs=pl.BlockSpec((tm_eff, H), lambda t, k: (t, 0)),
            scratch_shapes=[
                pltpu.VMEM((tm_eff, H), x.dtype),      # normalized x (per token tile)
                pltpu.VMEM((tm_eff, H), jnp.float32),  # down_proj accumulator
            ],
        ),
        compiler_params=pltpu.CompilerParams(
            dimension_semantics=("parallel", "arbitrary"),
            vmem_limit_bytes=vmem_limit),
        cost_estimate=cost,
    )(xt, ln_w2, gu_wt, down_wt)

    out = out[:T].reshape(B, S, H)
    return out, None


def _reference(x, ln_w, gate_w, up_w, down_w, eps):
    xf = x.astype(jnp.float32)
    var = jnp.mean(xf * xf, axis=-1, keepdims=True)
    xn = xf * jax.lax.rsqrt(var + eps) * ln_w.astype(jnp.float32)
    g = xn @ gate_w.T.astype(jnp.float32)
    u = xn @ up_w.T.astype(jnp.float32)
    h = (g * jax.nn.sigmoid(g)) * u
    return (h @ down_w.T.astype(jnp.float32)).astype(x.dtype)


if __name__ == "__main__":
    # Small Llama-like config: hidden_size=128, intermediate_size=512.
    # S=5 makes T=10 to exercise the token-padding path; ti=256 gives a
    # 2-step reduction over the intermediate axis.
    B, S, H, I = 2, 5, 128, 512
    eps = 1e-6
    dtype = jnp.float32

    key = jax.random.PRNGKey(0)
    kx, kg, ku, kd, kl = jax.random.split(key, 5)
    x = jax.random.normal(kx, (B, S, H), dtype=dtype)
    # torch nn.Linear weight convention: (out_features, in_features)
    gate_w = (jax.random.normal(kg, (I, H), dtype=dtype) * 0.02).astype(dtype)
    up_w   = (jax.random.normal(ku, (I, H), dtype=dtype) * 0.02).astype(dtype)
    down_w = (jax.random.normal(kd, (H, I), dtype=dtype) * 0.02).astype(dtype)
    ln_w   = (1.0 + 0.1 * jax.random.normal(kl, (H,), dtype=dtype)).astype(dtype)

    # Hoisted weight preparation (once per model, not per forward).
    gu_wt, down_wt, ti = prepare_mlp_weights(gate_w, up_w, down_w, ti=256)

    out, residual = neuron_llama_mlp(x, ln_w, gu_wt, down_wt, ti=ti, eps=eps)
    out = jax.block_until_ready(out)

    ref = _reference(x, ln_w, gate_w, up_w, down_w, eps)
    assert out.shape == (B, S, H)
    assert residual is None
    assert jnp.allclose(out, ref, atol=2e-4, rtol=2e-4), \
        f"max err {jnp.max(jnp.abs(out - ref))}"
    print("KERNEL_OK")
</pallas_src>

<mosaic_0001>
module attributes {stable_mosaic.version = 11 : i64} {
  func.func @_mlp_kernel(%arg0: i32, %arg1: i32, %arg2: memref<16x128xf32, #tpu.memory_space<vmem>>, %arg3: memref<1x128xf32, #tpu.memory_space<vmem>>, %arg4: memref<128x512xf32, #tpu.memory_space<vmem>>, %arg5: memref<256x128xf32, #tpu.memory_space<vmem>>, %arg6: memref<16x128xf32, #tpu.memory_space<vmem>>, %arg7: memref<16x128xf32, #tpu.memory_space<vmem>>, %arg8: memref<16x128xf32, #tpu.memory_space<vmem>>) attributes {dimension_semantics = [#tpu.dimension_semantics<parallel>, #tpu.dimension_semantics<arbitrary>], iteration_bounds = array<i64: 1, 2>, scalar_prefetch = 0 : i64, scratch_operands = 2 : i64, tpu.core_type = #tpu.core_type<tc>, window_params = [{transform_indices = @transform_0, window_bounds = array<i64: 16, 128>}, {pipeline_mode = #tpu.pipeline_mode<synchronous>, transform_indices = @transform_1, window_bounds = array<i64: 1, 128>}, {transform_indices = @transform_2, window_bounds = array<i64: 128, 512>}, {transform_indices = @transform_3, window_bounds = array<i64: 256, 128>}, {transform_indices = @transform_4, window_bounds = array<i64: 16, 128>}]} {
    %c0_i32 = arith.constant 0 : i32
    %0 = arith.cmpi eq, %arg1, %c0_i32 : i32
    %1 = arith.extui %0 : i1 to i32
    %c0_i32_0 = arith.constant 0 : i32
    %2 = arith.cmpi ne, %1, %c0_i32_0 : i32
    scf.if %2 {
      %c0_13 = arith.constant 0 : index
      %c0_14 = arith.constant 0 : index
      %23 = vector.load %arg2[%c0_13, %c0_14] : memref<16x128xf32, #tpu.memory_space<vmem>>, vector<16x128xf32>
      %24 = arith.mulf %23, %23 : vector<16x128xf32>
      %cst_15 = arith.constant dense<0.000000e+00> : vector<16xf32>
      %25 = vector.multi_reduction <add>, %24, %cst_15 [1] : vector<16x128xf32> to vector<16xf32>
      %26 = vector.shape_cast %25 : vector<16xf32> to vector<16x1xf32>
      %cst_16 = arith.constant 1.280000e+02 : f32
      %27 = vector.broadcast %cst_16 : f32 to vector<16x1xf32>
      %28 = arith.divf %26, %27 : vector<16x1xf32>
      %cst_17 = arith.constant 9.99999997E-7 : f32
      %29 = vector.broadcast %cst_17 : f32 to vector<16x1xf32>
      %30 = arith.addf %28, %29 : vector<16x1xf32>
      %31 = math.rsqrt %30 : vector<16x1xf32>
      %32 = vector.broadcast %31 : vector<16x1xf32> to vector<16x128xf32>
      %33 = arith.mulf %23, %32 : vector<16x128xf32>
      %c0_18 = arith.constant 0 : index
      %c0_19 = arith.constant 0 : index
      %34 = vector.load %arg3[%c0_18, %c0_19] : memref<1x128xf32, #tpu.memory_space<vmem>>, vector<1x128xf32>
      %35 = vector.broadcast %34 : vector<1x128xf32> to vector<16x128xf32>
      %36 = arith.mulf %33, %35 : vector<16x128xf32>
      %c0_20 = arith.constant 0 : index
      %c0_21 = arith.constant 0 : index
      %37 = vector.load %arg7[%c0_20, %c0_21] : memref<16x128xf32, #tpu.memory_space<vmem>>, vector<16x128xf32>
      tpu.vector_store %arg7[%c0_20, %c0_21], %36 {strides = array<i32>} : memref<16x128xf32, #tpu.memory_space<vmem>>, vector<16x128xf32>,
      %cst_22 = arith.constant 0.000000e+00 : f32
      %38 = vector.broadcast %cst_22 : f32 to vector<16x128xf32>
      %c0_23 = arith.constant 0 : index
      %c0_24 = arith.constant 0 : index
      %39 = vector.load %arg8[%c0_23, %c0_24] : memref<16x128xf32, #tpu.memory_space<vmem>>, vector<16x128xf32>
      tpu.vector_store %arg8[%c0_23, %c0_24], %38 {strides = array<i32>} : memref<16x128xf32, #tpu.memory_space<vmem>>, vector<16x128xf32>,
    } else {
    }
    %c0 = arith.constant 0 : index
    %c0_1 = arith.constant 0 : index
    %3 = vector.load %arg7[%c0, %c0_1] : memref<16x128xf32, #tpu.memory_space<vmem>>, vector<16x128xf32>
    %c0_2 = arith.constant 0 : index
    %c0_3 = arith.constant 0 : index
    %4 = vector.load %arg4[%c0_2, %c0_3] : memref<128x512xf32, #tpu.memory_space<vmem>>, vector<128x512xf32>
    %cst = arith.constant dense<0.000000e+00> : vector<16x512xf32>
    %5 = tpu.matmul %3, %4, %cst {dimension_numbers = #tpu.dot_dimension_numbers<[1], [0], [0], [1], [0, 0, 1, 1], [], []>} : vector<16x128xf32>, vector<128x512xf32>, vector<16x512xf32> -> vector<16x512xf32>
    %6 = vector.extract_strided_slice %5 {offsets = [0, 0], sizes = [16, 256], strides = [1, 1]} : vector<16x512xf32> to vector<16x256xf32>
    %7 = vector.extract_strided_slice %5 {offsets = [0, 256], sizes = [16, 256], strides = [1, 1]} : vector<16x512xf32> to vector<16x256xf32>
    %8 = arith.negf %6 : vector<16x256xf32>
    %9 = math.exp %8 : vector<16x256xf32>
    %cst_4 = arith.constant 1.000000e+00 : f32
    %10 = vector.broadcast %cst_4 : f32 to vector<16x256xf32>
    %11 = arith.addf %10, %9 : vector<16x256xf32>
    %12 = arith.divf %10, %11 : vector<16x256xf32>
    %13 = arith.mulf %6, %12 : vector<16x256xf32>
    %14 = arith.mulf %13, %7 : vector<16x256xf32>
    %c0_5 = arith.constant 0 : index
    %c0_6 = arith.constant 0 : index
    %15 = vector.load %arg8[%c0_5, %c0_6] : memref<16x128xf32, #tpu.memory_space<vmem>>, vector<16x128xf32>
    %c0_7 = arith.constant 0 : index
    %c0_8 = arith.constant 0 : index
    %16 = vector.load %arg5[%c0_7, %c0_8] : memref<256x128xf32, #tpu.memory_space<vmem>>, vector<256x128xf32>
    %cst_9 = arith.constant dense<0.000000e+00> : vector<16x128xf32>
    %17 = tpu.matmul %14, %16, %cst_9 {dimension_numbers = #tpu.dot_dimension_numbers<[1], [0], [0], [1], [0, 0, 1, 1], [], []>} : vector<16x256xf32>, vector<256x128xf32>, vector<16x128xf32> -> vector<16x128xf32>
    %18 = arith.addf %15, %17 : vector<16x128xf32>
    %c0_10 = arith.constant 0 : index
    %c0_11 = arith.constant 0 : index
    %19 = vector.load %arg8[%c0_10, %c0_11] : memref<16x128xf32, #tpu.memory_space<vmem>>, vector<16x128xf32>
    tpu.vector_store %arg8[%c0_10, %c0_11], %18 {strides = array<i32>} : memref<16x128xf32, #tpu.memory_space<vmem>>, vector<16x128xf32>,
    %c1_i32 = arith.constant 1 : i32
    %20 = arith.cmpi eq, %arg1, %c1_i32 : i32
    %21 = arith.extui %20 : i1 to i32
    %c0_i32_12 = arith.constant 0 : i32
    %22 = arith.cmpi ne, %21, %c0_i32_12 : i32
    scf.if %22 {
      %c0_13 = arith.constant 0 : index
      %c0_14 = arith.constant 0 : index
      %23 = vector.load %arg8[%c0_13, %c0_14] : memref<16x128xf32, #tpu.memory_space<vmem>>, vector<16x128xf32>
      %c0_15 = arith.constant 0 : index
      %c0_16 = arith.constant 0 : index
      %24 = vector.load %arg6[%c0_15, %c0_16] : memref<16x128xf32, #tpu.memory_space<vmem>>, vector<16x128xf32>
      tpu.vector_store %arg6[%c0_15, %c0_16], %23 {strides = array<i32>} : memref<16x128xf32, #tpu.memory_space<vmem>>, vector<16x128xf32>,
    } else {
    }
    return
  }
  func.func @transform_0(%arg0: i32, %arg1: i32) -> (i32, i32) {
    %c0_i32 = arith.constant 0 : i32
    %c0_i32_0 = arith.constant 0 : i32
    return %arg0, %c0_i32 : i32, i32
  }
  func.func @transform_1(%arg0: i32, %arg1: i32) -> (i32, i32) {
    %c0_i32 = arith.constant 0 : i32
    %c0_i32_0 = arith.constant 0 : i32
    %c0_i32_1 = arith.constant 0 : i32
    return %c0_i32, %c0_i32_0 : i32, i32
  }
  func.func @transform_2(%arg0: i32, %arg1: i32) -> (i32, i32) {
    %c0_i32 = arith.constant 0 : i32
    %c0_i32_0 = arith.constant 0 : i32
    return %c0_i32, %arg1 : i32, i32
  }
  func.func @transform_3(%arg0: i32, %arg1: i32) -> (i32, i32) {
    %c0_i32 = arith.constant 0 : i32
    %c0_i32_0 = arith.constant 0 : i32
    return %arg1, %c0_i32 : i32, i32
  }
  func.func @transform_4(%arg0: i32, %arg1: i32) -> (i32, i32) {
    %c0_i32 = arith.constant 0 : i32
    %c0_i32_0 = arith.constant 0 : i32
    return %arg0, %c0_i32 : i32, i32
  }
}

</mosaic_0001>

<llo_original>
// kernel: tpu_custom_call.1
$region0: #{tpu_custom_call.1}
  #allocation0 [shape = 'u32[]', space=smem, size = 0x4, offset = 0x4, fixed_abs, tag = 'smem constant byte address 0x4 - core index']
  #allocation1 [shape = 'u32[144,128]{1,0:T(1,128)}', space=vmem, size = 0x12000, scoped, tag = 'internal scratch']
  #allocation2 [shape = 'f32[16,128]{1,0:T(8,128)}', space=vmem, size = 0x2000, scoped, tag = 'scratch operand']
  #allocation3 [shape = 'f32[16,128]{1,0:T(8,128)}', space=vmem, size = 0x2000, scoped, tag = 'scratch operand']
  %s0 = inlined_call_operand.hbm [shape: f32[16,128], index: 0, kind: input, shape index: {}]
  %s1 = inlined_call_operand.vmem [shape: f32[1,128], index: 1, kind: input, shape index: {}]
  %s2 = inlined_call_operand.hbm [shape: f32[128,1024], index: 2, kind: input, shape index: {}]
  %s3 = inlined_call_operand.hbm [shape: f32[512,128], index: 3, kind: input, shape index: {}]
  %s4 = inlined_call_operand.hbm [shape: f32[16,128], index: 4, kind: output, shape index: {}]
  %s5 = sld [smem:[#allocation0]]
  $region69: #{tpu_custom_call.1} parent=0
    _
  %s7 = ssub.s32 1, %s5
  %s8 = scalar_select 0, %s7, %s5
  $region1: #{tpu_custom_call.1} parent=0
    #allocation4 [shape = 'u8[8192]{0}', space=vmem, size = 0x2000, scoped, tag = 'input window, operand 0, single buffered']
    #allocation5 [shape = 's32[2]{0}', space=sflag, size = 0x8, scoped, tag = 'scoped memory for tpu_custom_call.1']
    #allocation6 [shape = 's32[2]{0}', space=sflag, size = 0x8, scoped, tag = 'scoped memory for tpu_custom_call.1']
    #allocation7 [shape = 'u8[524288]{0}', space=vmem, size = 0x80000, scoped, tag = 'input window, operand 2']
    #allocation8 [shape = 's32[2]{0}', space=sflag, size = 0x8, scoped, tag = 'scoped memory for tpu_custom_call.1']
    #allocation9 [shape = 'u8[262144]{0}', space=vmem, size = 0x40000, scoped, tag = 'input window, operand 3']
    #allocation10 [shape = 'u8[8192]{0}', space=vmem, size = 0x2000, scoped, tag = 'output window, operand 0, single buffered']
    %9 = vsyncpa [#allocation5], 0
    %10 = vsyncpa [#allocation8], 0
    %s11 = scalar_lea.sflag [#allocation8], 1
    %12 = vsyncpa %s11, 0
    %13 = vsyncpa [#allocation6], 0
    loop: start=0, step=1, limit=4
    $region2: #{tpu_custom_call.1} parent=1 // loop_pre_header
      _
    $region3: #{tpu_custom_call.1} parent=1 // loop_header
      %s15 = sphi 0, %s19
      %p16 = scmp.ge.s32.totalorder %s15, 4
      %s22 = sphi 0, %s34
      %s23 = sphi 0, %s30
      %s24 = sphi 0, %s22
      %s25 = sphi 0, %s23
      %s26 = sphi 0, %s24
      %s27 = sphi 0, %s25
      %s37 = sphi 0, %s39
      %s40 = sphi 0, %s37
      %s41 = sphi 0, %s40
      %s57 = sphi 0, %s41
      %s61 = sphi 0, %s61
      %s63 = sphi 0, %s61
      %s64 = sphi 0, %s63
      %s78 = sphi 0, %s64
      %s84 = sphi 0, %s86
      %s87 = sphi 0, %s84
      %s88 = sphi 0, %s87
      %s104 = sphi 0, %s88
      %s110 = sphi 0, %s112
      %s113 = sphi 0, %s110
      %s114 = sphi 0, %s113
      %s130 = sphi 0, %s114
      %s136 = sphi 0, %s138
      %s139 = sphi 0, %s136
      %s140 = sphi 0, %s139
      %s156 = sphi 0, %s140
    $region4: #{tpu_custom_call.1} parent=1 // loop_header_branch
      %18 = sbr.rel (%p16) target = $region8
    $region5: #{tpu_custom_call.1} parent=1 // loop_body
      %s20 = ssub.s32 %s15, 1
      %s21 = ssub.s32 %s15, 2
      %s28 = sadd.s32 1, %s23
      %p29 = scmp.ge.s32.totalorder %s28, 2
      %s30 = scalar_select %p29, 0, %s28
      %s31 = sadd.s32 1, %s22
      %s32 = scalar_select %p29, %s31, %s22
      %p33 = scmp.ge.s32.totalorder %s32, 1
      %s34 = scalar_select %p33, 0, %s32
      %s35 = ssub.s32 %s22, %s34
      %p36 = scmp.eq.s32.totalorder %s35, 0
      %s38 = sadd.s32 %s37, 1
      %s39 = scalar_select %p36, %s37, %s38
      %p42 = pneg %p36
      %p43 = scmp.eq.s32.totalorder %s15, 1
      %p44 = por %p42, %p43
      %p45 = scmp.ne.s32.totalorder %s37, %s40
      %p46 = scmp.eq.s32.totalorder %s15, 0
      %p47 = por %p45, %p46
      %p48 = scmp.ne.s32.totalorder %s37, %s40
      %p49 = scmp.eq.s32.totalorder %s20, 1
      %p50 = por %p48, %p49
      %p51 = scmp.ne.s32.totalorder %s40, %s41
      %p52 = scmp.eq.s32.totalorder %s20, 0
      %p53 = por %p51, %p52
      %p54 = scmp.ne.s32.totalorder %s40, %s41
      %p55 = scmp.eq.s32.totalorder %s21, 1
      %p56 = por %p54, %p55
      %p58 = scmp.ne.s32.totalorder %s41, %s57
      %p59 = scmp.eq.s32.totalorder %s21, 0
      %p60 = por %p58, %p59
      %s62 = sadd.s32 %s61, 1
      %p65 = scmp.eq.s32.totalorder %s15, 1
      %p66 = scmp.ne.s32.totalorder %s61, %s63
      %p67 = scmp.eq.s32.totalorder %s15, 0
      %p68 = por %p66, %p67
      %p69 = scmp.ne.s32.totalorder %s61, %s63
      %p70 = scmp.eq.s32.totalorder %s20, 1
      %p71 = por %p69, %p70
      %p72 = scmp.ne.s32.totalorder %s63, %s64
      %p73 = scmp.eq.s32.totalorder %s20, 0
      %p74 = por %p72, %p73
      %p75 = scmp.ne.s32.totalorder %s63, %s64
      %p76 = scmp.eq.s32.totalorder %s21, 1
      %p77 = por %p75, %p76
      %p79 = scmp.ne.s32.totalorder %s64, %s78
      %p80 = scmp.eq.s32.totalorder %s21, 0
      %p81 = por %p79, %p80
      %s82 = ssub.s32 %s23, %s30
      %p83 = scmp.eq.s32.totalorder %s82, 0
      %s85 = sadd.s32 %s84, 1
      %s86 = scalar_select %p83, %s84, %s85
      %p89 = pneg %p83
      %p90 = scmp.eq.s32.totalorder %s15, 1
      %p91 = por %p89, %p90
      %p92 = scmp.ne.s32.totalorder %s84, %s87
      %p93 = scmp.eq.s32.totalorder %s15, 0
      %p94 = por %p92, %p93
      %p95 = scmp.ne.s32.totalorder %s84, %s87
      %p96 = scmp.eq.s32.totalorder %s20, 1
      %p97 = por %p95, %p96
      %p98 = scmp.ne.s32.totalorder %s87, %s88
      %p99 = scmp.eq.s32.totalorder %s20, 0
      %p100 = por %p98, %p99
      %p101 = scmp.ne.s32.totalorder %s87, %s88
      %p102 = scmp.eq.s32.totalorder %s21, 1
      %p103 = por %p101, %p102
      %p105 = scmp.ne.s32.totalorder %s88, %s104
      %p106 = scmp.eq.s32.totalorder %s21, 0
      %p107 = por %p105, %p106
      %s108 = ssub.s32 %s23, %s30
      %p109 = scmp.eq.s32.totalorder %s108, 0
      %s111 = sadd.s32 %s110, 1
      %s112 = scalar_select %p109, %s110, %s111
      %p115 = pneg %p109
      %p116 = scmp.eq.s32.totalorder %s15, 1
      %p117 = por %p115, %p116
      %p118 = scmp.ne.s32.totalorder %s110, %s113
      %p119 = scmp.eq.s32.totalorder %s15, 0
      %p120 = por %p118, %p119
      %p121 = scmp.ne.s32.totalorder %s110, %s113
      %p122 = scmp.eq.s32.totalorder %s20, 1
      %p123 = por %p121, %p122
      %p124 = scmp.ne.s32.totalorder %s113, %s114
      %p125 = scmp.eq.s32.totalorder %s20, 0
      %p126 = por %p124, %p125
      %p127 = scmp.ne.s32.totalorder %s113, %s114
      %p128 = scmp.eq.s32.totalorder %s21, 1
      %p129 = por %p127, %p128
      %p131 = scmp.ne.s32.totalorder %s114, %s130
      %p132 = scmp.eq.s32.totalorder %s21, 0
      %p133 = por %p131, %p132
      %s134 = ssub.s32 %s22, %s34
      %p135 = scmp.eq.s32.totalorder %s134, 0
      %s137 = sadd.s32 %s136, 1
      %s138 = scalar_select %p135, %s136, %s137
      %p141 = pneg %p135
      %p142 = scmp.eq.s32.totalorder %s15, 1
      %p143 = por %p141, %p142
      %p144 = scmp.ne.s32.totalorder %s136, %s139
      %p145 = scmp.eq.s32.totalorder %s15, 0
      %p146 = por %p144, %p145
      %p147 = scmp.ne.s32.totalorder %s136, %s139
      %p148 = scmp.eq.s32.totalorder %s20, 1
      %p149 = por %p147, %p148
      %p150 = scmp.ne.s32.totalorder %s139, %s140
      %p151 = scmp.eq.s32.totalorder %s20, 0
      %p152 = por %p150, %p151
      %p153 = scmp.ne.s32.totalorder %s139, %s140
      %p154 = scmp.eq.s32.totalorder %s21, 1
      %p155 = por %p153, %p154
      %p157 = scmp.ne.s32.totalorder %s140, %s156
      %p158 = scmp.eq.s32.totalorder %s21, 0
      %p159 = por %p157, %p158
      %p160 = scmp.le.s32.totalorder 1, %s15
      %p161 = scmp.lt.s32.totalorder %s15, 3
      %p162 = pnand %p160, %p161
      %p163 = pneg %p162
      // Predicated region
      $region9: #{tpu_custom_call.1} parent=5 // pred_check
        _
      $region10: #{tpu_custom_call.1} parent=5 // pred_check_branch
        %165 = sbr.rel (%p162) target = $region12
      $region11: #{tpu_custom_call.1} parent=5 // pred_region
        %s166 = ssub.s32 %s15, 1
        // Predicated region
        $region13: #{tpu_custom_call.1} parent=11 // pred_check
          %p167 = pneg %p53
        $region14: #{tpu_custom_call.1} parent=11 // pred_check_branch
          %169 = sbr.rel (%p167) target = $region16
        $region15: #{tpu_custom_call.1} parent=11 // pred_region
          %s170 = smul.u32 2, %s24
          %s172 = ssub.s32 256, 256
          %173 = vsyncadd [#allocation5], %s172
          %s174 = smul.addr %s170, 128
          %s175 = scalar_lea.hbm %s0, %s174
          %s176 = sshll.u32 [#allocation4], 4
          %s177 = int_to_ptr.vmem [resolvable:$true] %s176
          %182 = dma.hbm_to_vmem [thread:$0]  %s175, 256, %s177, [#allocation5], 128, 128, 8
        $region16: #{tpu_custom_call.1} parent=11 // pred_fallthru
          _
        // Predicated region
        $region17: #{tpu_custom_call.1} parent=11 // pred_check
          %p183 = pneg %p74
        $region18: #{tpu_custom_call.1} parent=11 // pred_check_branch
          %185 = sbr.rel (%p183) target = $region20
        $region19: #{tpu_custom_call.1} parent=11 // pred_region
          _
        $region20: #{tpu_custom_call.1} parent=11 // pred_fallthru
          _
      $region12: #{tpu_custom_call.1} parent=5 // pred_fallthru
        _
      %p186 = scmp.lt.s32.totalorder %s15, 2
      // Predicated region
      $region21: #{tpu_custom_call.1} parent=5 // pred_check
        %p187 = pneg %p186
      $region22: #{tpu_custom_call.1} parent=5 // pred_check_branch
        %189 = sbr.rel (%p187) target = $region24
      $region23: #{tpu_custom_call.1} parent=5 // pred_region
        // Predicated region
        $region25: #{tpu_custom_call.1} parent=23 // pred_check
          %p190 = pneg %p94
        $region26: #{tpu_custom_call.1} parent=23 // pred_check_branch
          %192 = sbr.rel (%p190) target = $region28
        $region27: #{tpu_custom_call.1} parent=23 // pred_region
          %s193 = sand.u32 %s15, 1
          %s194 = scalar_lea.sflag [#allocation8], %s193
          %s195 = sand.u32 %s84, 1
          %s196 = smul.addr %s195, 512
          %s197 = scalar_lea.vmem [#allocation7], %s196
          %s198 = smul.u32 4, %s23
          %s200 = ssub.s32 8192, 8192
          %201 = vsyncadd %s194, %s200
          %s202 = smul.addr %s198, 128
          %s203 = scalar_lea.hbm %s2, %s202
          %s204 = sshll.u32 %s197, 4
          %s205 = int_to_ptr.vmem [resolvable:$true] %s204
          %210 = dma.hbm_to_vmem [thread:$0]  %s203, 8192, %s205, %s194, 1024, 512, 32
        $region28: #{tpu_custom_call.1} parent=23 // pred_fallthru
          _
        // Predicated region
        $region29: #{tpu_custom_call.1} parent=23 // pred_check
          %p211 = pneg %p120
        $region30: #{tpu_custom_call.1} parent=23 // pred_check_branch
          %213 = sbr.rel (%p211) target = $region32
        $region31: #{tpu_custom_call.1} parent=23 // pred_region
          %s214 = sand.u32 %s15, 1
          %s215 = scalar_lea.sflag [#allocation8], %s214
          %s216 = sand.u32 %s110, 1
          %s217 = smul.addr %s216, 256
          %s218 = scalar_lea.vmem [#allocation9], %s217
          %s219 = smul.u32 32, %s23
          %s221 = ssub.s32 4096, 4096
          %222 = vsyncadd %s215, %s221
          %s223 = smul.addr %s219, 128
          %s224 = scalar_lea.hbm %s3, %s223
          %s225 = sshll.u32 %s218, 4
          %s226 = int_to_ptr.vmem [resolvable:$true] %s225
          %231 = dma.hbm_to_vmem [thread:$0]  %s224, 4096, %s226, %s215, 128, 128, 8
        $region32: #{tpu_custom_call.1} parent=23 // pred_fallthru
          _
      $region24: #{tpu_custom_call.1} parent=5 // pred_fallthru
        _
      %p232 = scmp.le.s32.totalorder 1, %s15
      %p233 = scmp.lt.s32.totalorder %s15, 3
      %p234 = pnand %p232, %p233
      %p235 = pneg %p234
      // Predicated region
      $region33: #{tpu_custom_call.1} parent=5 // pred_check
        _
      $region34: #{tpu_custom_call.1} parent=5 // pred_check_branch
        %237 = sbr.rel (%p234) target = $region36
      $region35: #{tpu_custom_call.1} parent=5 // pred_region
        %s238 = ssub.s32 %s15, 1
        // Predicated region
        $region37: #{tpu_custom_call.1} parent=35 // pred_check
          %p239 = pneg %p53
        $region38: #{tpu_custom_call.1} parent=35 // pred_check_branch
          %241 = sbr.rel (%p239) target = $region40
        $region39: #{tpu_custom_call.1} parent=35 // pred_region
          %242 = dma.done [#allocation5], 256
        $region40: #{tpu_custom_call.1} parent=35 // pred_fallthru
          _
        %s243 = sand.u32 %s20, 1
        %s244 = scalar_lea.sflag [#allocation8], %s243
        %s245 = sand.u32 %s87, 1
        %s246 = smul.addr %s245, 512
        %s247 = scalar_lea.vmem [#allocation7], %s246
        // Predicated region
        $region41: #{tpu_custom_call.1} parent=35 // pred_check
          %p248 = pneg %p100
        $region42: #{tpu_custom_call.1} parent=35 // pred_check_branch
          %250 = sbr.rel (%p248) target = $region44
        $region43: #{tpu_custom_call.1} parent=35 // pred_region
          %251 = dma.done %s244, 8192
        $region44: #{tpu_custom_call.1} parent=35 // pred_fallthru
          _
        %s252 = sand.u32 %s20, 1
        %s253 = scalar_lea.sflag [#allocation8], %s252
        %s254 = sand.u32 %s113, 1
        %s255 = smul.addr %s254, 256
        %s256 = scalar_lea.vmem [#allocation9], %s255
        // Predicated region
        $region45: #{tpu_custom_call.1} parent=35 // pred_check
          %p257 = pneg %p126
        $region46: #{tpu_custom_call.1} parent=35 // pred_check_branch
          %259 = sbr.rel (%p257) target = $region48
        $region47: #{tpu_custom_call.1} parent=35 // pred_region
          %260 = dma.done %s253, 4096
        $region48: #{tpu_custom_call.1} parent=35 // pred_fallthru
          _
        %p261 = pneg %p53
        %p262 = pneg %p50
        %p263 = pneg %p74
        %p264 = pneg %p71
        %s265 = sand.u32 %s20, 1
        %s266 = scalar_lea.sflag [#allocation8], %s265
        %s267 = sand.u32 %s87, 1
        %s268 = smul.addr %s267, 512
        %s269 = scalar_lea.vmem [#allocation7], %s268
        %p270 = pneg %p100
        %p271 = pneg %p97
        %s272 = sand.u32 %s20, 1
        %s273 = scalar_lea.sflag [#allocation8], %s272
        %s274 = sand.u32 %s113, 1
        %s275 = smul.addr %s274, 256
        %s276 = scalar_lea.vmem [#allocation9], %s275
        %p277 = pneg %p126
        %p278 = pneg %p123
        %p279 = pneg %p152
        %p280 = pneg %p149
        %s281 = smul.u32 2, %s24
        %s282 = smul.u32 4, %s25
        %s283 = smul.u32 32, %s25
        %s284 = smul.u32 2, %s24
        %p285 = scmp.eq.s32.totalorder %s25, 0
        // Predicated region
        $region49: #{tpu_custom_call.1} parent=35 // pred_check
          %p286 = pneg %p285
        $region50: #{tpu_custom_call.1} parent=35 // pred_check_branch
          %288 = sbr.rel (%p286) target = $region52
        $region51: #{tpu_custom_call.1} parent=35 // pred_region
          %v289 = vld [vmem:[#allocation4] sm:$0xff]
          %v290 = vld [vmem:[#allocation4 + $0x8] sm:$0xff]
          %v291 = vmul.f32 %v289, %v289
          %v292 = vmul.f32 %v290, %v290
          %293 = vadd.xlane.f32.xlu0 %v291
          %v294 = vpop.xlane.xlu0 %293
          %295 = vadd.xlane.f32.xlu0 %v292
          %v296 = vpop.xlane.xlu0 %295
          %v297 = vrcp.pop 128.0
          %v298 = vmul.f32 %v294, %v297
          %v299 = vmul.f32 %v296, %v297
          %v300 = vadd.f32 %v298, 1e-06
          %v301 = vadd.f32 %v299, 1e-06
          %v302 = vrsqrt.pop %v300
          %v303 = vrsqrt.pop %v301
          %v304 = vmul.f32 %v289, %v302
          %v305 = vmul.f32 %v290, %v303
          %v306 = vld [vmem:[%s1] sm:$0x1]
          %v308 = vlaneseq
          %v309 = vshrl.u32 %v308, 7
          %v310 = vsub.s32 0, %v309
          %v311 = vrot.slane %v306, %v310
          %v313 = vmul.f32 %v304, %v311
          %v314 = vmul.f32 %v305, %v311
          %315 = vst [vmem:[#allocation2] sm:$0xff] %v313
          %316 = vst [vmem:[#allocation2 + $0x8] sm:$0xff] %v314
          %317 = vst [vmem:[#allocation3] sm:$0xff] 0.0
          %318 = vst [vmem:[#allocation3 + $0x8] sm:$0xff] 0.0
        $region52: #{tpu_custom_call.1} parent=35 // pred_fallthru
          _
        %v319 = vld [vmem:[#allocation2] sm:$0xff]
        %v320 = vld [vmem:[#allocation2 + $0x8] sm:$0xff]
        %v321 = vld [vmem:[%s247] sm:$0xff]
        %v322 = vld [vmem:[%s247 + $0x8] sm:$0xff]
        %v323 = vld [vmem:[%s247 + $0x10] sm:$0xff]
        %v324 = vld [vmem:[%s247 + $0x18] sm:$0xff]
        %v325 = vld [vmem:[%s247 + $0x20] sm:$0xff]
        %v326 = vld [vmem:[%s247 + $0x28] sm:$0xff]
        %v327 = vld [vmem:[%s247 + $0x30] sm:$0xff]
        %v328 = vld [vmem:[%s247 + $0x38] sm:$0xff]
        %v329 = vld [vmem:[%s247 + $0x40] sm:$0xff]
        %v330 = vld [vmem:[%s247 + $0x48] sm:$0xff]
        %v331 = vld [vmem:[%s247 + $0x50] sm:$0xff]
        %v332 = vld [vmem:[%s247 + $0x58] sm:$0xff]
        %v333 = vld [vmem:[%s247 + $0x60] sm:$0xff]
        %v334 = vld [vmem:[%s247 + $0x68] sm:$0xff]
        %v335 = vld [vmem:[%s247 + $0x70] sm:$0xff]
        %v336 = vld [vmem:[%s247 + $0x78] sm:$0xff]
        %v337 = vld [vmem:[%s247 + $0x80] sm:$0xff]
        %v338 = vld [vmem:[%s247 + $0x88] sm:$0xff]
        %v339 = vld [vmem:[%s247 + $0x90] sm:$0xff]
        %v340 = vld [vmem:[%s247 + $0x98] sm:$0xff]
        %v341 = vld [vmem:[%s247 + $0xa0] sm:$0xff]
        %v342 = vld [vmem:[%s247 + $0xa8] sm:$0xff]
        %v343 = vld [vmem:[%s247 + $0xb0] sm:$0xff]
        %v344 = vld [vmem:[%s247 + $0xb8] sm:$0xff]
        %v345 = vld [vmem:[%s247 + $0xc0] sm:$0xff]
        %v346 = vld [vmem:[%s247 + $0xc8] sm:$0xff]
        %v347 = vld [vmem:[%s247 + $0xd0] sm:$0xff]
        %v348 = vld [vmem:[%s247 + $0xd8] sm:$0xff]
        %v349 = vld [vmem:[%s247 + $0xe0] sm:$0xff]
        %v350 = vld [vmem:[%s247 + $0xe8] sm:$0xff]
        %v351 = vld [vmem:[%s247 + $0xf0] sm:$0xff]
        %v352 = vld [vmem:[%s247 + $0xf8] sm:$0xff]
        %v353 = vld [vmem:[%s247 + $0x100] sm:$0xff]
        %v354 = vld [vmem:[%s247 + $0x108] sm:$0xff]
        %v355 = vld [vmem:[%s247 + $0x110] sm:$0xff]
        %v356 = vld [vmem:[%s247 + $0x118] sm:$0xff]
        %v357 = vld [vmem:[%s247 + $0x120] sm:$0xff]
        %v358 = vld [vmem:[%s247 + $0x128] sm:$0xff]
        %v359 = vld [vmem:[%s247 + $0x130] sm:$0xff]
        %v360 = vld [vmem:[%s247 + $0x138] sm:$0xff]
        %v361 = vld [vmem:[%s247 + $0x140] sm:$0xff]
        %v362 = vld [vmem:[%s247 + $0x148] sm:$0xff]
        %v363 = vld [vmem:[%s247 + $0x150] sm:$0xff]
        %v364 = vld [vmem:[%s247 + $0x158] sm:$0xff]
        %v365 = vld [vmem:[%s247 + $0x160] sm:$0xff]
        %v366 = vld [vmem:[%s247 + $0x168] sm:$0xff]
        %v367 = vld [vmem:[%s247 + $0x170] sm:$0xff]
        %v368 = vld [vmem:[%s247 + $0x178] sm:$0xff]
        %v369 = vld [vmem:[%s247 + $0x180] sm:$0xff]
        %v370 = vld [vmem:[%s247 + $0x188] sm:$0xff]
        %v371 = vld [vmem:[%s247 + $0x190] sm:$0xff]
        %v372 = vld [vmem:[%s247 + $0x198] sm:$0xff]
        %v373 = vld [vmem:[%s247 + $0x1a0] sm:$0xff]
        %v374 = vld [vmem:[%s247 + $0x1a8] sm:$0xff]
        %v375 = vld [vmem:[%s247 + $0x1b0] sm:$0xff]
        %v376 = vld [vmem:[%s247 + $0x1b8] sm:$0xff]
        %v377 = vld [vmem:[%s247 + $0x1c0] sm:$0xff]
        %v378 = vld [vmem:[%s247 + $0x1c8] sm:$0xff]
        %v379 = vld [vmem:[%s247 + $0x1d0] sm:$0xff]
        %v380 = vld [vmem:[%s247 + $0x1d8] sm:$0xff]
        %v381 = vld [vmem:[%s247 + $0x1e0] sm:$0xff]
        %v382 = vld [vmem:[%s247 + $0x1e8] sm:$0xff]
        %v383 = vld [vmem:[%s247 + $0x1f0] sm:$0xff]
        %v384 = vld [vmem:[%s247 + $0x1f8] sm:$0xff]
        %385 = vmatprep.subr.mxu0 %v382
        %386 = vmatpush1.msra.mxu0 %v381
        %387 = vmatprep.subr.mxu0 %v378
        %388 = vmatpush1.msra.mxu0 %v377
        %389 = vmatprep.subr.mxu0 %v374
        %390 = vmatpush1.msra.mxu0 %v373
        %391 = vmatprep.subr.mxu0 %v370
        %392 = vmatpush1.msra.mxu0 %v369
        %393 = vmatprep.subr.mxu0 %v366
        %394 = vmatpush1.msra.mxu0 %v365
        %395 = vmatprep.subr.mxu0 %v362
        %396 = vmatpush1.msra.mxu0 %v361
        %397 = vmatprep.subr.mxu0 %v358
        %398 = vmatpush1.msra.mxu0 %v357
        %399 = vmatprep.subr.mxu0 %v354
        %400 = vmatpush1.msra.mxu0 %v353
        %401 = vmatprep.subr.mxu0 %v350
        %402 = vmatpush1.msra.mxu0 %v349
        %403 = vmatprep.subr.mxu0 %v346
        %404 = vmatpush1.msra.mxu0 %v345
        %405 = vmatprep.subr.mxu0 %v342
        %406 = vmatpush1.msra.mxu0 %v341
        %407 = vmatprep.subr.mxu0 %v338
        %408 = vmatpush1.msra.mxu0 %v337
        %409 = vmatprep.subr.mxu0 %v334
        %410 = vmatpush1.msra.mxu0 %v333
        %411 = vmatprep.subr.mxu0 %v330
        %412 = vmatpush1.msra.mxu0 %v329
        %413 = vmatprep.subr.mxu0 %v326
        %414 = vmatpush1.msra.mxu0 %v325
        %415 = vmatprep.subr.mxu0 %v322
        %416 = vmatpush1.msra.mxu0 %v321
        %417 = vmatprep.subr.mxu0 0.0
        %418 = vmatpush2.msra.mxu0 0.0
        %419 = vmatprep.subr.mxu0 0.0
        %420 = vmatpush2.msra.mxu0 0.0
        %421 = vmatprep.subr.mxu0 0.0
        %422 = vmatpush2.msra.mxu0 0.0
        %423 = vmatprep.subr.mxu0 0.0
        %424 = vmatpush2.msra.mxu0 0.0
        %425 = vmatprep.subr.mxu0 0.0
        %426 = vmatpush2.msra.mxu0 0.0
        %427 = vmatprep.subr.mxu0 0.0
        %428 = vmatpush2.msra.mxu0 0.0
        %429 = vmatprep.subr.mxu0 0.0
        %430 = vmatpush2.msra.mxu0 0.0
        %431 = vmatprep.subr.mxu0 0.0
        %432 = vmatpush2.msra.mxu0 0.0
        %433 = vmatprep.subr.mxu0 0.0
        %434 = vmatpush2.msra.mxu0 0.0
        %435 = vmatprep.subr.mxu0 0.0
        %436 = vmatpush2.msra.mxu0 0.0
        %437 = vmatprep.subr.mxu0 0.0
        %438 = vmatpush2.msra.mxu0 0.0
        %439 = vmatprep.subr.mxu0 0.0
        %440 = vmatpush2.msra.mxu0 0.0
        %441 = vmatprep.subr.mxu0 0.0
        %442 = vmatpush2.msra.mxu0 0.0
        %443 = vmatprep.subr.mxu0 0.0
        %444 = vmatpush2.msra.mxu0 0.0
        %445 = vmatprep.subr.mxu0 0.0
        %446 = vmatpush2.msra.mxu0 0.0
        %447 = vmatprep.subr.mxu0 0.0
        %448 = vmatpush2.msra.mxu0 0.0
        %449 = vmatprep.mubr.f32.mxu0 0.0
        %450 = vmatmul.mubr.f32.gmra.mxu0 %v319
        %v451 = vpop.f32.mrf.mxu0
        %v452 = vadd.f32 0.0, %v451
        %v453 = vpop.f32.mrf.mxu0
        %v454 = vadd.f32 0.0, %v453
        %455 = vmatprep.mubr.f32.mxu0 0.0
        %456 = vmatmul.mubr.f32.gmra.mxu0 %v320
        %v457 = vpop.f32.mrf.mxu0
        %v458 = vadd.f32 0.0, %v457
        %v459 = vpop.f32.mrf.mxu0
        %v460 = vadd.f32 0.0, %v459
        %461 = vdwg.mxu0
        %462 = vmatprep.subr.mxu0 %v384
        %463 = vmatpush1.msra.mxu0 %v383
        %464 = vmatprep.subr.mxu0 %v380
        %465 = vmatpush1.msra.mxu0 %v379
        %466 = vmatprep.subr.mxu0 %v376
        %467 = vmatpush1.msra.mxu0 %v375
        %468 = vmatprep.subr.mxu0 %v372
        %469 = vmatpush1.msra.mxu0 %v371
        %470 = vmatprep.subr.mxu0 %v368
        %471 = vmatpush1.msra.mxu0 %v367
        %472 = vmatprep.subr.mxu0 %v364
        %473 = vmatpush1.msra.mxu0 %v363
        %474 = vmatprep.subr.mxu0 %v360
        %475 = vmatpush1.msra.mxu0 %v359
        %476 = vmatprep.subr.mxu0 %v356
        %477 = vmatpush1.msra.mxu0 %v355
        %478 = vmatprep.subr.mxu0 %v352
        %479 = vmatpush1.msra.mxu0 %v351
        %480 = vmatprep.subr.mxu0 %v348
        %481 = vmatpush1.msra.mxu0 %v347
        %482 = vmatprep.subr.mxu0 %v344
        %483 = vmatpush1.msra.mxu0 %v343
        %484 = vmatprep.subr.mxu0 %v340
        %485 = vmatpush1.msra.mxu0 %v339
        %486 = vmatprep.subr.mxu0 %v336
        %487 = vmatpush1.msra.mxu0 %v335
        %488 = vmatprep.subr.mxu0 %v332
        %489 = vmatpush1.msra.mxu0 %v331
        %490 = vmatprep.subr.mxu0 %v328
        %491 = vmatpush1.msra.mxu0 %v327
        %492 = vmatprep.subr.mxu0 %v324
        %493 = vmatpush1.msra.mxu0 %v323
        %494 = vmatprep.subr.mxu0 0.0
        %495 = vmatpush2.msra.mxu0 0.0
        %496 = vmatprep.subr.mxu0 0.0
        %497 = vmatpush2.msra.mxu0 0.0
        %498 = vmatprep.subr.mxu0 0.0
        %499 = vmatpush2.msra.mxu0 0.0
        %500 = vmatprep.subr.mxu0 0.0
        %501 = vmatpush2.msra.mxu0 0.0
        %502 = vmatprep.subr.mxu0 0.0
        %503 = vmatpush2.msra.mxu0 0.0
        %504 = vmatprep.subr.mxu0 0.0
        %505 = vmatpush2.msra.mxu0 0.0
        %506 = vmatprep.subr.mxu0 0.0
        %507 = vmatpush2.msra.mxu0 0.0
        %508 = vmatprep.subr.mxu0 0.0
        %509 = vmatpush2.msra.mxu0 0.0
        %510 = vmatprep.subr.mxu0 0.0
        %511 = vmatpush2.msra.mxu0 0.0
        %512 = vmatprep.subr.mxu0 0.0
        %513 = vmatpush2.msra.mxu0 0.0
        %514 = vmatprep.subr.mxu0 0.0
        %515 = vmatpush2.msra.mxu0 0.0
        %516 = vmatprep.subr.mxu0 0.0
        %517 = vmatpush2.msra.mxu0 0.0
        %518 = vmatprep.subr.mxu0 0.0
        %519 = vmatpush2.msra.mxu0 0.0
        %520 = vmatprep.subr.mxu0 0.0
        %521 = vmatpush2.msra.mxu0 0.0
        %522 = vmatprep.subr.mxu0 0.0
        %523 = vmatpush2.msra.mxu0 0.0
        %524 = vmatprep.subr.mxu0 0.0
        %525 = vmatpush2.msra.mxu0 0.0
        %526 = vmatprep.mubr.f32.mxu0 0.0
        %527 = vmatmul.mubr.f32.gmra.mxu0 %v319
        %v528 = vpop.f32.mrf.mxu0
        %v529 = vadd.f32 0.0, %v528
        %v530 = vpop.f32.mrf.mxu0
        %v531 = vadd.f32 0.0, %v530
        %532 = vmatprep.mubr.f32.mxu0 0.0
        %533 = vmatmul.mubr.f32.gmra.mxu0 %v320
        %v534 = vpop.f32.mrf.mxu0
        %v535 = vadd.f32 0.0, %v534
        %v536 = vpop.f32.mrf.mxu0
        %v537 = vadd.f32 0.0, %v536
        %538 = vdwg.mxu0
        %v539 = vxor.u32 %v452, 2147483648
        %v540 = vxor.u32 %v454, 2147483648
        %v541 = vxor.u32 %v458, 2147483648
        %v542 = vxor.u32 %v460, 2147483648
        %v543 = vmul.f32 %v539, 1.442695
        %v544 = vpow.pop %v543
        %v545 = vmul.f32 %v540, 1.442695
        %v546 = vpow.pop %v545
        %v547 = vmul.f32 %v541, 1.442695
        %v548 = vpow.pop %v547
        %v549 = vmul.f32 %v542, 1.442695
        %v550 = vpow.pop %v549
        %v551 = vadd.f32 %v544, 1.0
        %v552 = vadd.f32 %v546, 1.0
        %v553 = vadd.f32 %v548, 1.0
        %v554 = vadd.f32 %v550, 1.0
        %v555 = vrcp.pop %v551
        %v556 = vmul.f32 1.0, %v555
        %v557 = vrcp.pop %v552
        %v558 = vmul.f32 1.0, %v557
        %v559 = vrcp.pop %v553
        %v560 = vmul.f32 1.0, %v559
        %v561 = vrcp.pop %v554
        %v562 = vmul.f32 1.0, %v561
        %v563 = vmul.f32 %v452, %v556
        %v564 = vmul.f32 %v454, %v558
        %v565 = vmul.f32 %v458, %v560
        %v566 = vmul.f32 %v460, %v562
        %v567 = vmul.f32 %v563, %v529
        %v568 = vmul.f32 %v564, %v531
        %v569 = vmul.f32 %v565, %v535
        %v570 = vmul.f32 %v566, %v537
        %v571 = vld [vmem:[#allocation3] sm:$0xff]
        %v572 = vld [vmem:[#allocation3 + $0x8] sm:$0xff]
        %v573 = vld [vmem:[%s256] sm:$0xff]
        %v574 = vld [vmem:[%s256 + $0x8] sm:$0xff]
        %v575 = vld [vmem:[%s256 + $0x10] sm:$0xff]
        %v576 = vld [vmem:[%s256 + $0x18] sm:$0xff]
        %v577 = vld [vmem:[%s256 + $0x20] sm:$0xff]
        %v578 = vld [vmem:[%s256 + $0x28] sm:$0xff]
        %v579 = vld [vmem:[%s256 + $0x30] sm:$0xff]
        %v580 = vld [vmem:[%s256 + $0x38] sm:$0xff]
        %v581 = vld [vmem:[%s256 + $0x40] sm:$0xff]
        %v582 = vld [vmem:[%s256 + $0x48] sm:$0xff]
        %v583 = vld [vmem:[%s256 + $0x50] sm:$0xff]
        %v584 = vld [vmem:[%s256 + $0x58] sm:$0xff]
        %v585 = vld [vmem:[%s256 + $0x60] sm:$0xff]
        %v586 = vld [vmem:[%s256 + $0x68] sm:$0xff]
        %v587 = vld [vmem:[%s256 + $0x70] sm:$0xff]
        %v588 = vld [vmem:[%s256 + $0x78] sm:$0xff]
        %v589 = vld [vmem:[%s256 + $0x80] sm:$0xff]
        %v590 = vld [vmem:[%s256 + $0x88] sm:$0xff]
        %v591 = vld [vmem:[%s256 + $0x90] sm:$0xff]
        %v592 = vld [vmem:[%s256 + $0x98] sm:$0xff]
        %v593 = vld [vmem:[%s256 + $0xa0] sm:$0xff]
        %v594 = vld [vmem:[%s256 + $0xa8] sm:$0xff]
        %v595 = vld [vmem:[%s256 + $0xb0] sm:$0xff]
        %v596 = vld [vmem:[%s256 + $0xb8] sm:$0xff]
        %v597 = vld [vmem:[%s256 + $0xc0] sm:$0xff]
        %v598 = vld [vmem:[%s256 + $0xc8] sm:$0xff]
        %v599 = vld [vmem:[%s256 + $0xd0] sm:$0xff]
        %v600 = vld [vmem:[%s256 + $0xd8] sm:$0xff]
        %v601 = vld [vmem:[%s256 + $0xe0] sm:$0xff]
        %v602 = vld [vmem:[%s256 + $0xe8] sm:$0xff]
        %v603 = vld [vmem:[%s256 + $0xf0] sm:$0xff]
        %v604 = vld [vmem:[%s256 + $0xf8] sm:$0xff]
        %605 = vmatprep.subr.mxu0 0.0
        %606 = vmatpush1.msra.mxu0 %v588
        %607 = vmatprep.subr.mxu0 0.0
        %608 = vmatpush1.msra.mxu0 %v587
        %609 = vmatprep.subr.mxu0 0.0
        %610 = vmatpush1.msra.mxu0 %v586
        %611 = vmatprep.subr.mxu0 0.0
        %612 = vmatpush1.msra.mxu0 %v585
        %613 = vmatprep.subr.mxu0 0.0
        %614 = vmatpush1.msra.mxu0 %v584
        %615 = vmatprep.subr.mxu0 0.0
        %616 = vmatpush1.msra.mxu0 %v583
        %617 = vmatprep.subr.mxu0 0.0
        %618 = vmatpush1.msra.mxu0 %v582
        %619 = vmatprep.subr.mxu0 0.0
        %620 = vmatpush1.msra.mxu0 %v581
        %621 = vmatprep.subr.mxu0 0.0
        %622 = vmatpush1.msra.mxu0 %v580
        %623 = vmatprep.subr.mxu0 0.0
        %624 = vmatpush1.msra.mxu0 %v579
        %625 = vmatprep.subr.mxu0 0.0
        %626 = vmatpush1.msra.mxu0 %v578
        %627 = vmatprep.subr.mxu0 0.0
        %628 = vmatpush1.msra.mxu0 %v577
        %629 = vmatprep.subr.mxu0 0.0
        %630 = vmatpush1.msra.mxu0 %v576
        %631 = vmatprep.subr.mxu0 0.0
        %632 = vmatpush1.msra.mxu0 %v575
        %633 = vmatprep.subr.mxu0 0.0
        %634 = vmatpush1.msra.mxu0 %v574
        %635 = vmatprep.subr.mxu0 0.0
        %636 = vmatpush1.msra.mxu0 %v573
        %637 = vmatprep.subr.mxu0 0.0
        %638 = vmatpush2.msra.mxu0 %v604
        %639 = vmatprep.subr.mxu0 0.0
        %640 = vmatpush2.msra.mxu0 %v603
        %641 = vmatprep.subr.mxu0 0.0
        %642 = vmatpush2.msra.mxu0 %v602
        %643 = vmatprep.subr.mxu0 0.0
        %644 = vmatpush2.msra.mxu0 %v601
        %645 = vmatprep.subr.mxu0 0.0
        %646 = vmatpush2.msra.mxu0 %v600
        %647 = vmatprep.subr.mxu0 0.0
        %648 = vmatpush2.msra.mxu0 %v599
        %649 = vmatprep.subr.mxu0 0.0
        %650 = vmatpush2.msra.mxu0 %v598
        %651 = vmatprep.subr.mxu0 0.0
        %652 = vmatpush2.msra.mxu0 %v597
        %653 = vmatprep.subr.mxu0 0.0
        %654 = vmatpush2.msra.mxu0 %v596
        %655 = vmatprep.subr.mxu0 0.0
        %656 = vmatpush2.msra.mxu0 %v595
        %657 = vmatprep.subr.mxu0 0.0
        %658 = vmatpush2.msra.mxu0 %v594
        %659 = vmatprep.subr.mxu0 0.0
        %660 = vmatpush2.msra.mxu0 %v593
        %661 = vmatprep.subr.mxu0 0.0
        %662 = vmatpush2.msra.mxu0 %v592
        %663 = vmatprep.subr.mxu0 0.0
        %664 = vmatpush2.msra.mxu0 %v591
        %665 = vmatprep.subr.mxu0 0.0
        %666 = vmatpush2.msra.mxu0 %v590
        %667 = vmatprep.subr.mxu0 0.0
        %668 = vmatpush2.msra.mxu0 %v589
        %669 = vmatprep.mubr.f32.mxu0 %v568
        %670 = vmatmul.mubr.f32.gmra.mxu0 %v567
        %v671 = vpop.f32.mrf.mxu0
        %v672 = vadd.f32 0.0, %v671
        %v673 = vpop.f32.mrf.mxu0
        %674 = vmatprep.mubr.f32.mxu0 %v570
        %675 = vmatmul.mubr.f32.gmra.mxu0 %v569
        %v676 = vpop.f32.mrf.mxu0
        %v677 = vadd.f32 0.0, %v676
        %v678 = vpop.f32.mrf.mxu0
        %679 = vdwg.mxu0
        %v680 = vadd.f32 %v571, %v672
        %v681 = vadd.f32 %v572, %v677
        %682 = vst [vmem:[#allocation3] sm:$0xff] %v680
        %683 = vst [vmem:[#allocation3 + $0x8] sm:$0xff] %v681
        %p684 = scmp.eq.s32.totalorder %s25, 1
        // Predicated region
        $region53: #{tpu_custom_call.1} parent=35 // pred_check
          %p685 = pneg %p684
        $region54: #{tpu_custom_call.1} parent=35 // pred_check_branch
          %687 = sbr.rel (%p685) target = $region56
        $region55: #{tpu_custom_call.1} parent=35 // pred_region
          %v688 = vld [vmem:[#allocation3] sm:$0xff]
          %v689 = vld [vmem:[#allocation3 + $0x8] sm:$0xff]
          %690 = vst [vmem:[#allocation10] sm:$0xff] %v688
          %691 = vst [vmem:[#allocation10 + $0x8] sm:$0xff] %v689
        $region56: #{tpu_custom_call.1} parent=35 // pred_fallthru
          _
        // Predicated region
        $region57: #{tpu_custom_call.1} parent=35 // pred_check
          %p692 = pneg %p149
        $region58: #{tpu_custom_call.1} parent=35 // pred_check_branch
          %694 = sbr.rel (%p692) target = $region60
        $region59: #{tpu_custom_call.1} parent=35 // pred_region
          %s695 = smul.u32 2, %s24
          %s697 = ssub.s32 256, 256
          %698 = vsyncadd [#allocation6], %s697
          %s699 = smul.addr %s695, 128
          %s700 = scalar_lea.hbm %s4, %s699
          %s701 = sshll.u32 [#allocation10], 4
          %s702 = int_to_ptr.vmem [resolvable:$true] %s701
          %707 = dma.vmem_to_hbm [thread:$0]  %s702, 256, %s700, [#allocation6], 128, 128, 8
        $region60: #{tpu_custom_call.1} parent=35 // pred_fallthru
          _
        // Predicated region
        $region61: #{tpu_custom_call.1} parent=35 // pred_check
          %p708 = pneg %p149
        $region62: #{tpu_custom_call.1} parent=35 // pred_check_branch
          %710 = sbr.rel (%p708) target = $region64
        $region63: #{tpu_custom_call.1} parent=35 // pred_region
          %711 = dma.done [#allocation6], 256
        $region64: #{tpu_custom_call.1} parent=35 // pred_fallthru
          _
      $region36: #{tpu_custom_call.1} parent=5 // pred_fallthru
        _
      %p712 = scmp.le.s32.totalorder 2, %s15
      // Predicated region
      $region65: #{tpu_custom_call.1} parent=5 // pred_check
        %p713 = pneg %p712
      $region66: #{tpu_custom_call.1} parent=5 // pred_check_branch
        %715 = sbr.rel (%p713) target = $region68
      $region67: #{tpu_custom_call.1} parent=5 // pred_region
        %s716 = ssub.s32 %s15, 2
      $region68: #{tpu_custom_call.1} parent=5 // pred_fallthru
        _
    $region6: #{tpu_custom_call.1} parent=1 // loop_footer
      %s19 = sadd.s32 1, %s15
    $region7: #{tpu_custom_call.1} parent=1 // loop_footer_branch
      %14 = sbr.rel target = $region3
    $region8: #{tpu_custom_call.1} parent=1 // loop_exit
      _
    %717 = vsyncpa [#allocation5], 1
    %s718 = scalar_lea.sflag [#allocation5], 1
    %719 = vsyncpa %s718, 1
    %720 = vsyncpa [#allocation8], 1
    %s721 = scalar_lea.sflag [#allocation8], 1
    %722 = vsyncpa %s721, 1
    %723 = vsyncpa [#allocation6], 1
    %s724 = scalar_lea.sflag [#allocation6], 1
    %725 = vsyncpa %s724, 1

</llo_original>
